<compile_context>
chip_gen: v7x
topology: tpu7x:2x2x1
jax: 0.10.0
libtpu: 0.0.40
codegen_flags: <defaults>
</compile_context>

<pallas_src>
import jax
import jax.numpy as jnp
from jax.experimental import pallas as pl
from jax.experimental.pallas import tpu as pltpu


LANE_COLS = 512  # lane-dense last dim: large multiple of 128


def _sigmoid_kernel(x_ref, o_ref):
    # Compute in f32 (v5e has no bf16 VPU/EUP path), cast back on store.
    x = x_ref[...].astype(jnp.float32)
    e = jnp.exp(-x)                                   # EUP
    y = pl.reciprocal(1.0 + e, approx=False)          # exact 1/(1+e)
    o_ref[...] = y.astype(o_ref.dtype)


def _round_up(x, m):
    return -(-x // m) * m


def _vmem_capacity_bytes():
    try:
        return int(pltpu.get_tpu_info().vmem_capacity_bytes)
    except Exception:
        return 64 * 1024 * 1024  # conservative fallback (v7x per-TC VMEM)


def _target_block_rows(itemsize):
    """Largest block rows such that 2 in + 2 out double-buffers fit comfortably."""
    vmem = _vmem_capacity_bytes()
    # 4 buffers (double-buffered in + out) must stay well under VMEM; also cap
    # each block at ~8 MiB (past ~512-wide tiles the HBM roofline plateaus).
    per_block_bytes = min(8 * 1024 * 1024, vmem // 8)
    rows = per_block_bytes // (LANE_COLS * itemsize)
    sublane = max(8, 32 // itemsize)  # 8 for f32, 16 for bf16, 32 for int8
    return max(sublane, (rows // sublane) * sublane)


def prediction_layer(x, task_type='classification'):
    """Pallas implementation of PredictionLayer.forward for any-shaped x."""
    if task_type not in ('classification', 'regression'):
        raise ValueError('task_type must be classification or regression')

    if task_type == 'regression':
        # Identity: avoid a full HBM read+write for no computation.
        return x

    orig_shape = x.shape
    orig_dtype = x.dtype
    total = int(x.size)
    itemsize = jnp.dtype(orig_dtype).itemsize
    sublane = max(8, 32 // itemsize)

    # Lane-dense 2D layout: (rows, LANE_COLS), rows padded for tiling.
    rows = _round_up(pl.cdiv(total, LANE_COLS), sublane)
    block_rows = min(_target_block_rows(itemsize), rows)
    n_blocks = pl.cdiv(rows, block_rows)
    block_rows = _round_up(pl.cdiv(rows, n_blocks), sublane)  # balance blocks
    padded_rows = n_blocks * block_rows
    padded_total = padded_rows * LANE_COLS

    xf = jnp.ravel(x)
    if padded_total != total:
        xf = jnp.pad(xf, (0, padded_total - total))
    x2 = xf.reshape(padded_rows, LANE_COLS)

    block_bytes = block_rows * LANE_COLS * itemsize
    vmem_cap = _vmem_capacity_bytes()
    vmem_limit = max(32 * 1024 * 1024,
                     min(vmem_cap, 4 * block_bytes + (16 << 20)))

    out2 = pl.pallas_call(
        _sigmoid_kernel,
        out_shape=jax.ShapeDtypeStruct((padded_rows, LANE_COLS), orig_dtype),
        grid_spec=pl.GridSpec(
            grid=(n_blocks,),
            in_specs=[pl.BlockSpec((block_rows, LANE_COLS), lambda i: (i, 0))],
            out_specs=pl.BlockSpec((block_rows, LANE_COLS), lambda i: (i, 0)),
        ),
        compiler_params=pltpu.CompilerParams(
            dimension_semantics=("parallel",),
            vmem_limit_bytes=int(vmem_limit),
        ),
        # Padded intermediate is produced in this function, so it is donatable:
        # compute sigmoid in place and avoid a separate output allocation.
        input_output_aliases={0: 0},
        cost_estimate=pl.CostEstimate(
            flops=2 * padded_total,
            transcendentals=padded_total,
            bytes_accessed=2 * padded_total * itemsize,
        ),
    )(x2)

    # Strip padding and restore original shape.
    return out2.reshape(-1)[:total].reshape(orig_shape)


if __name__ == "__main__":
    key = jax.random.PRNGKey(0)

    # Small logits tensor consistent with a prediction head: batch=8, hidden=32.
    x = jax.random.normal(key, (8, 32), dtype=jnp.float32)

    # classification path: sigmoid
    y_cls = jax.block_until_ready(prediction_layer(x, task_type='classification'))
    assert jnp.allclose(y_cls, jax.nn.sigmoid(x), atol=1e-6), "classification mismatch"

    # regression path: identity (no kernel launch)
    y_reg = jax.block_until_ready(prediction_layer(x, task_type='regression'))
    assert jnp.allclose(y_reg, x), "regression mismatch"

    # Odd shape to exercise lane-dense padding / slicing path.
    x2 = jax.random.normal(jax.random.PRNGKey(1), (33, 5), dtype=jnp.float32)
    y2 = jax.block_until_ready(prediction_layer(x2, task_type='classification'))
    assert jnp.allclose(y2, jax.nn.sigmoid(x2), atol=1e-6), "padded-shape mismatch"

    print("KERNEL_OK")
</pallas_src>

<mosaic_0001>
module attributes {stable_mosaic.version = 11 : i64} {
  func.func @_sigmoid_kernel(%arg0: i32, %arg1: memref<8x512xf32, #tpu.memory_space<vmem>>, %arg2: memref<8x512xf32, #tpu.memory_space<vmem>>) attributes {dimension_semantics = [#tpu.dimension_semantics<parallel>], iteration_bounds = array<i64: 1>, scalar_prefetch = 0 : i64, scratch_operands = 0 : i64, tpu.core_type = #tpu.core_type<tc>, window_params = [{transform_indices = @transform_0, window_bounds = array<i64: 8, 512>}, {transform_indices = @transform_1, window_bounds = array<i64: 8, 512>}]} {
    %c0 = arith.constant 0 : index
    %c0_0 = arith.constant 0 : index
    %0 = vector.load %arg1[%c0, %c0_0] : memref<8x512xf32, #tpu.memory_space<vmem>>, vector<8x512xf32>
    %cst = arith.constant 0.000000e+00 : f32
    %1 = vector.broadcast %cst : f32 to vector<8x512xf32>
    %2 = arith.subf %1, %0 : vector<8x512xf32>
    %3 = math.exp %2 : vector<8x512xf32>
    %cst_1 = arith.constant 1.000000e+00 : f32
    %4 = vector.broadcast %cst_1 : f32 to vector<8x512xf32>
    %5 = arith.addf %4, %3 : vector<8x512xf32>
    %6 = tpu.reciprocal %5 : vector<8x512xf32> -> vector<8x512xf32>
    %c0_2 = arith.constant 0 : index
    %c0_3 = arith.constant 0 : index
    %7 = vector.load %arg2[%c0_2, %c0_3] : memref<8x512xf32, #tpu.memory_space<vmem>>, vector<8x512xf32>
    tpu.vector_store %arg2[%c0_2, %c0_3], %6 {strides = array<i32>} : memref<8x512xf32, #tpu.memory_space<vmem>>, vector<8x512xf32>,
    return
  }
  func.func @transform_0(%arg0: i32) -> (i32, i32) {
    %c0_i32 = arith.constant 0 : i32
    %c0_i32_0 = arith.constant 0 : i32
    return %arg0, %c0_i32 : i32, i32
  }
  func.func @transform_1(%arg0: i32) -> (i32, i32) {
    %c0_i32 = arith.constant 0 : i32
    %c0_i32_0 = arith.constant 0 : i32
    return %arg0, %c0_i32 : i32, i32
  }
}

</mosaic_0001>

<llo_original>
// kernel: tpu_custom_call.1
$region0: #{tpu_custom_call.1}
  #allocation0 [shape = 'u32[]', space=smem, size = 0x4, offset = 0x4, fixed_abs, tag = 'smem constant byte address 0x4 - core index']
  #allocation1 [shape = 'u32[144,128]{1,0:T(1,128)}', space=vmem, size = 0x12000, scoped, tag = 'internal scratch']
  %s0 = inlined_call_operand.hbm [shape: f32[8,512], index: 0, kind: input, shape index: {}, may-alias: {0,1}]
  %s1 = inlined_call_operand.hbm [shape: f32[8,512], index: 1, kind: output, shape index: {}, may-alias: {0,1}]
  %s2 = sld [smem:[#allocation0]]
  $region18: #{tpu_custom_call.1} parent=0
    _
  %s4 = ssub.s32 1, %s2
  %s5 = scalar_select 0, %s4, %s2
  $region1: #{tpu_custom_call.1} parent=0
    #allocation2 [shape = 'u8[16384]{0}', space=vmem, size = 0x4000, scoped, tag = 'input window, operand 0, single buffered']
    #allocation3 [shape = 's32[1]{0}', space=sflag, size = 0x4, scoped, tag = 'scoped memory for tpu_custom_call.1']
    #allocation4 [shape = 's32[1]{0}', space=sflag, size = 0x4, scoped, tag = 'scoped memory for tpu_custom_call.1']
    #allocation5 [shape = 'u8[16384]{0}', space=vmem, size = 0x4000, scoped, tag = 'output window, operand 0, single buffered']
    %6 = vsyncpa [#allocation3], 0
    %7 = vsyncpa [#allocation4], 0
    // Predicated region
    $region2: #{tpu_custom_call.1} parent=1 // pred_check
      _
    $region3: #{tpu_custom_call.1} parent=1 // pred_check_branch
      %9 = sbr.rel (0) target = $region5
    $region4: #{tpu_custom_call.1} parent=1 // pred_region
      %s11 = ssub.s32 512, 512
      %12 = vsyncadd [#allocation3], %s11
      %s14 = sshll.u32 [#allocation2], 4
      %s15 = int_to_ptr.vmem [resolvable:$true] %s14
      %17 = dma.hbm_to_vmem [thread:$0]  %s0, 512, %s15, [#allocation3]
    $region5: #{tpu_custom_call.1} parent=1 // pred_fallthru
      _
    // Predicated region
    $region6: #{tpu_custom_call.1} parent=1 // pred_check
      _
    $region7: #{tpu_custom_call.1} parent=1 // pred_check_branch
      %19 = sbr.rel (0) target = $region9
    $region8: #{tpu_custom_call.1} parent=1 // pred_region
      %20 = dma.done [#allocation3], 512
    $region9: #{tpu_custom_call.1} parent=1 // pred_fallthru
      _
    %v21 = vld [vmem:[#allocation2] sm:$0xff]
    %v22 = vld [vmem:[#allocation2 + $0x8] sm:$0xff]
    %v23 = vld [vmem:[#allocation2 + $0x10] sm:$0xff]
    %v24 = vld [vmem:[#allocation2 + $0x18] sm:$0xff]
    %v25 = vsub.f32 0.0, %v21
    %v26 = vsub.f32 0.0, %v22
    %v27 = vsub.f32 0.0, %v23
    %v28 = vsub.f32 0.0, %v24
    %v29 = vmul.f32 %v25, 1.442695
    %v30 = vpow.pop %v29
    %v31 = vmul.f32 %v26, 1.442695
    %v32 = vpow.pop %v31
    %v33 = vmul.f32 %v27, 1.442695
    %v34 = vpow.pop %v33
    %v35 = vmul.f32 %v28, 1.442695
    %v36 = vpow.pop %v35
    %v37 = vadd.f32 %v30, 1.0
    %v38 = vadd.f32 %v32, 1.0
    %v39 = vadd.f32 %v34, 1.0
    %v40 = vadd.f32 %v36, 1.0
    %v41 = vrcp.pop %v37
    %v42 = vrcp.pop %v38
    %v43 = vrcp.pop %v39
    %v44 = vrcp.pop %v40
    %45 = vst [vmem:[#allocation5] sm:$0xff] %v41
    %46 = vst [vmem:[#allocation5 + $0x8] sm:$0xff] %v42
    %47 = vst [vmem:[#allocation5 + $0x10] sm:$0xff] %v43
    %48 = vst [vmem:[#allocation5 + $0x18] sm:$0xff] %v44
    // Predicated region
    $region10: #{tpu_custom_call.1} parent=1 // pred_check
      _
    $region11: #{tpu_custom_call.1} parent=1 // pred_check_branch
      %50 = sbr.rel (0) target = $region13
    $region12: #{tpu_custom_call.1} parent=1 // pred_region
      %s52 = ssub.s32 512, 512
      %53 = vsyncadd [#allocation4], %s52
      %s55 = sshll.u32 [#allocation5], 4
      %s56 = int_to_ptr.vmem [resolvable:$true] %s55
      %58 = dma.vmem_to_hbm [thread:$0]  %s56, 512, %s1, [#allocation4]
    $region13: #{tpu_custom_call.1} parent=1 // pred_fallthru
      _
    // Predicated region
    $region14: #{tpu_custom_call.1} parent=1 // pred_check
      _
    $region15: #{tpu_custom_call.1} parent=1 // pred_check_branch
      %60 = sbr.rel (0) target = $region17
    $region16: #{tpu_custom_call.1} parent=1 // pred_region
      %61 = dma.done [#allocation4], 512
    $region17: #{tpu_custom_call.1} parent=1 // pred_fallthru
      _
    %62 = vsyncpa [#allocation3], 1
    %63 = vsyncpa [#allocation4], 1

</llo_original>
